<compile_context>
chip_gen: v7x
topology: tpu7x:2x2x1
jax: 0.10.0
libtpu: 0.0.40
codegen_flags: <defaults>
</compile_context>

<pallas_src>
import jax
import jax.numpy as jnp
from jax.experimental import pallas as pl
from jax.experimental.pallas import tpu as pltpu


def se_kernel(x_ref, w1_ref, b1_ref, w2_ref, b2_ref, o_ref):
    # x_ref block: (B_blk*C, HW) -- rows = (image, channel), lanes = spatial.
    x = x_ref[...]
    # AdaptiveAvgPool2d(1): mean over the spatial (lane) axis, f32 accumulation.
    pooled = jnp.mean(x.astype(jnp.float32), axis=1, keepdims=True)      # (B_blk*C, 1)
    # 1x1 conv (C -> R) for all images in the block at once (block-diag weights).
    h = jnp.dot(w1_ref[...], pooled,
                preferred_element_type=jnp.float32) + b1_ref[...]        # (B_blk*R, 1)
    # SiLU
    h = h * jax.nn.sigmoid(h)
    # 1x1 conv (R -> C), block-diagonal.
    s = jnp.dot(w2_ref[...], h,
                preferred_element_type=jnp.float32) + b2_ref[...]        # (B_blk*C, 1)
    # Sigmoid gate, then per-row (per-channel) rescale broadcast over lanes.
    s = jax.nn.sigmoid(s)
    o_ref[...] = x * s.astype(x.dtype)


def _pick_images_per_block(n, c, hw, r, itemsize,
                           target_tile_bytes=1 << 20,      # ~1 MiB input tile
                           max_tile_bytes=2 << 20,         # 4x (in+out dbl-buf) <= 8 MiB
                           max_bdiag_weight_bytes=1 << 20):
    """Choose how many images each grid step processes."""
    per_image = c * hw * itemsize

    def valid(d):
        if n % d != 0:
            return False
        # (8,128) rule: sublane dim must be a multiple of 8 or the full extent.
        if (d * c) % 8 != 0 and d != n:
            return False
        return True

    cands = [d for d in range(1, n + 1) if valid(d)]

    def fits(d):
        return (d * per_image <= max_tile_bytes
                and 2 * d * d * r * c * itemsize <= max_bdiag_weight_bytes)

    fitting = [d for d in cands if fits(d)]
    if not fitting:
        # TODO(synk): for very large C*HW add an HW-tile reduction axis
        # (grid=(N, HW//t), accumulate pooled sums in VMEM scratch, rescale in
        # a second pass) instead of a single-read fused kernel.
        return min(cands)

    reaching = [d for d in fitting if d * per_image >= target_tile_bytes]
    # Smallest block that reaches the target keeps the grid as long as possible
    # (grid length >= 2 matters for v7x's two TensorCores); otherwise take the
    # largest block that fits.
    return min(reaching) if reaching else max(fitting)


def squeeze_excitation(x, w1, b1, w2, b2):
    """x: (N, C, H, W); w1: (R, C); b1: (R, 1); w2: (C, R); b2: (C, 1)."""
    n, c, h, w = x.shape
    r = w1.shape[0]
    hw = h * w
    itemsize = jnp.dtype(x.dtype).itemsize

    b_blk = _pick_images_per_block(n, c, hw, r, itemsize)
    rows_blk = b_blk * c
    grid_len = n // b_blk

    # rows = batch*channel -> fully packed sublanes even for small C.
    x2 = x.reshape(n * c, hw)

    # Block-diagonal gate weights: one (B_blk*R, B_blk*C) @ (B_blk*C, 1) matmul
    # handles the first 1x1 conv for every image in a grid step (likewise for
    # the second conv) -- no per-image loop, no in-kernel reshape.
    eye = jnp.eye(b_blk, dtype=w1.dtype)
    w1b = jnp.kron(eye, w1)                       # (B_blk*R, B_blk*C)
    w2b = jnp.kron(eye, w2)                       # (B_blk*C, B_blk*R)
    b1b = jnp.tile(b1, (b_blk, 1))                # (B_blk*R, 1)
    b2b = jnp.tile(b2, (b_blk, 1))                # (B_blk*C, 1)

    w_itemsize = jnp.dtype(w1.dtype).itemsize
    cost = pl.CostEstimate(
        flops=2 * n * c * hw + 4 * n * r * c,
        transcendentals=n * (r + c),
        bytes_accessed=2 * n * c * hw * itemsize
        + grid_len * (w1b.size + w2b.size + b1b.size + b2b.size) * w_itemsize,
    )

    out = pl.pallas_call(
        se_kernel,
        out_shape=jax.ShapeDtypeStruct((n * c, hw), x.dtype),
        grid_spec=pltpu.PrefetchScalarGridSpec(
            num_scalar_prefetch=0,
            grid=(grid_len,),
            in_specs=[
                pl.BlockSpec((rows_blk, hw), lambda i: (i, 0)),          # x tile
                pl.BlockSpec((b_blk * r, rows_blk), lambda i: (0, 0)),   # w1 (block-diag)
                pl.BlockSpec((b_blk * r, 1), lambda i: (0, 0)),          # b1 (tiled)
                pl.BlockSpec((rows_blk, b_blk * r), lambda i: (0, 0)),   # w2 (block-diag)
                pl.BlockSpec((rows_blk, 1), lambda i: (0, 0)),           # b2 (tiled)
            ],
            out_specs=pl.BlockSpec((rows_blk, hw), lambda i: (i, 0)),
        ),
        compiler_params=pltpu.CompilerParams(
            dimension_semantics=("parallel",),
            vmem_limit_bytes=32 * 1024 * 1024,
        ),
        cost_estimate=cost,
    )(x2, w1b, b1b, w2b, b2b)

    return out.reshape(n, c, h, w)


def squeeze_excitation_ref(x, w1, b1, w2, b2):
    """Pure-JAX reference matching the PyTorch forward."""
    pooled = x.mean(axis=(2, 3))                    # (N, C)
    hid = pooled @ w1.T + b1[:, 0]                  # (N, R)
    hid = hid * jax.nn.sigmoid(hid)                 # SiLU
    s = hid @ w2.T + b2[:, 0]                       # (N, C)
    s = jax.nn.sigmoid(s)
    return x * s[:, :, None, None]


if __name__ == "__main__":
    # Module shapes: in_channels=4, reduced_dim=2; input NCHW = (2, 4, 16, 16)
    N, C, H, W = 2, 4, 16, 16
    R = 2

    key = jax.random.PRNGKey(0)
    kx, kw1, kb1, kw2, kb2 = jax.random.split(key, 5)

    x = jax.random.normal(kx, (N, C, H, W), dtype=jnp.float32)
    # nn.Conv2d(in_channels, reduced_dim, 1): weight (R, C, 1, 1) -> (R, C), bias (R,)
    w1 = 0.1 * jax.random.normal(kw1, (R, C), dtype=jnp.float32)
    b1 = 0.1 * jax.random.normal(kb1, (R, 1), dtype=jnp.float32)
    # nn.Conv2d(reduced_dim, in_channels, 1): weight (C, R, 1, 1) -> (C, R), bias (C,)
    w2 = 0.1 * jax.random.normal(kw2, (C, R), dtype=jnp.float32)
    b2 = 0.1 * jax.random.normal(kb2, (C, 1), dtype=jnp.float32)

    out = squeeze_excitation(x, w1, b1, w2, b2)
    out = jax.block_until_ready(out)

    ref = squeeze_excitation_ref(x, w1, b1, w2, b2)
    assert out.shape == (N, C, H, W)
    assert jnp.allclose(out, ref, atol=1e-5, rtol=1e-5), "mismatch vs reference"

    print("KERNEL_OK")
</pallas_src>

<mosaic_0001>
module attributes {stable_mosaic.version = 11 : i64} {
  func.func @se_kernel(%arg0: i32, %arg1: memref<8x256xf32, #tpu.memory_space<vmem>>, %arg2: memref<4x8xf32, #tpu.memory_space<vmem>>, %arg3: memref<4x1xf32, #tpu.memory_space<vmem>>, %arg4: memref<8x4xf32, #tpu.memory_space<vmem>>, %arg5: memref<8x1xf32, #tpu.memory_space<vmem>>, %arg6: memref<8x256xf32, #tpu.memory_space<vmem>>) attributes {dimension_semantics = [#tpu.dimension_semantics<parallel>], iteration_bounds = array<i64: 1>, scalar_prefetch = 0 : i64, scratch_operands = 0 : i64, tpu.core_type = #tpu.core_type<tc>, window_params = [{transform_indices = @transform_0, window_bounds = array<i64: 8, 256>}, {pipeline_mode = #tpu.pipeline_mode<synchronous>, transform_indices = @transform_1, window_bounds = array<i64: 4, 8>}, {pipeline_mode = #tpu.pipeline_mode<synchronous>, transform_indices = @transform_2, window_bounds = array<i64: 4, 1>}, {pipeline_mode = #tpu.pipeline_mode<synchronous>, transform_indices = @transform_3, window_bounds = array<i64: 8, 4>}, {pipeline_mode = #tpu.pipeline_mode<synchronous>, transform_indices = @transform_4, window_bounds = array<i64: 8, 1>}, {transform_indices = @transform_5, window_bounds = array<i64: 8, 256>}]} {
    %c0 = arith.constant 0 : index
    %c0_0 = arith.constant 0 : index
    %0 = vector.load %arg1[%c0, %c0_0] : memref<8x256xf32, #tpu.memory_space<vmem>>, vector<8x256xf32>
    %cst = arith.constant dense<0.000000e+00> : vector<8xf32>
    %1 = vector.multi_reduction <add>, %0, %cst [1] : vector<8x256xf32> to vector<8xf32>
    %2 = vector.shape_cast %1 : vector<8xf32> to vector<8x1xf32>
    %cst_1 = arith.constant 2.560000e+02 : f32
    %3 = vector.broadcast %cst_1 : f32 to vector<8x1xf32>
    %4 = arith.divf %2, %3 : vector<8x1xf32>
    %c0_2 = arith.constant 0 : index
    %c0_3 = arith.constant 0 : index
    %5 = vector.load %arg2[%c0_2, %c0_3] : memref<4x8xf32, #tpu.memory_space<vmem>>, vector<4x8xf32>
    %cst_4 = arith.constant dense<0.000000e+00> : vector<4x1xf32>
    %6 = tpu.matmul %5, %4, %cst_4 {dimension_numbers = #tpu.dot_dimension_numbers<[1], [0], [0], [1], [0, 0, 1, 1], [], []>} : vector<4x8xf32>, vector<8x1xf32>, vector<4x1xf32> -> vector<4x1xf32>
    %c0_5 = arith.constant 0 : index
    %c0_6 = arith.constant 0 : index
    %7 = vector.load %arg3[%c0_5, %c0_6] : memref<4x1xf32, #tpu.memory_space<vmem>>, vector<4x1xf32>
    %8 = arith.addf %6, %7 : vector<4x1xf32>
    %9 = arith.negf %8 : vector<4x1xf32>
    %10 = math.exp %9 : vector<4x1xf32>
    %cst_7 = arith.constant 1.000000e+00 : f32
    %11 = vector.broadcast %cst_7 : f32 to vector<4x1xf32>
    %12 = arith.addf %11, %10 : vector<4x1xf32>
    %13 = arith.divf %11, %12 : vector<4x1xf32>
    %14 = arith.mulf %8, %13 : vector<4x1xf32>
    %c0_8 = arith.constant 0 : index
    %c0_9 = arith.constant 0 : index
    %15 = vector.load %arg4[%c0_8, %c0_9] : memref<8x4xf32, #tpu.memory_space<vmem>>, vector<8x4xf32>
    %cst_10 = arith.constant dense<0.000000e+00> : vector<8x1xf32>
    %16 = tpu.matmul %15, %14, %cst_10 {dimension_numbers = #tpu.dot_dimension_numbers<[1], [0], [0], [1], [0, 0, 1, 1], [], []>} : vector<8x4xf32>, vector<4x1xf32>, vector<8x1xf32> -> vector<8x1xf32>
    %c0_11 = arith.constant 0 : index
    %c0_12 = arith.constant 0 : index
    %17 = vector.load %arg5[%c0_11, %c0_12] : memref<8x1xf32, #tpu.memory_space<vmem>>, vector<8x1xf32>
    %18 = arith.addf %16, %17 : vector<8x1xf32>
    %19 = arith.negf %18 : vector<8x1xf32>
    %20 = math.exp %19 : vector<8x1xf32>
    %cst_13 = arith.constant 1.000000e+00 : f32
    %21 = vector.broadcast %cst_13 : f32 to vector<8x1xf32>
    %22 = arith.addf %21, %20 : vector<8x1xf32>
    %23 = arith.divf %21, %22 : vector<8x1xf32>
    %24 = vector.broadcast %23 : vector<8x1xf32> to vector<8x256xf32>
    %25 = arith.mulf %0, %24 : vector<8x256xf32>
    %c0_14 = arith.constant 0 : index
    %c0_15 = arith.constant 0 : index
    %26 = vector.load %arg6[%c0_14, %c0_15] : memref<8x256xf32, #tpu.memory_space<vmem>>, vector<8x256xf32>
    tpu.vector_store %arg6[%c0_14, %c0_15], %25 {strides = array<i32>} : memref<8x256xf32, #tpu.memory_space<vmem>>, vector<8x256xf32>,
    return
  }
  func.func @transform_0(%arg0: i32) -> (i32, i32) {
    %c0_i32 = arith.constant 0 : i32
    %c0_i32_0 = arith.constant 0 : i32
    return %arg0, %c0_i32 : i32, i32
  }
  func.func @transform_1(%arg0: i32) -> (i32, i32) {
    %c0_i32 = arith.constant 0 : i32
    %c0_i32_0 = arith.constant 0 : i32
    %c0_i32_1 = arith.constant 0 : i32
    return %c0_i32, %c0_i32_0 : i32, i32
  }
  func.func @transform_2(%arg0: i32) -> (i32, i32) {
    %c0_i32 = arith.constant 0 : i32
    %c0_i32_0 = arith.constant 0 : i32
    %c0_i32_1 = arith.constant 0 : i32
    return %c0_i32, %c0_i32_0 : i32, i32
  }
  func.func @transform_3(%arg0: i32) -> (i32, i32) {
    %c0_i32 = arith.constant 0 : i32
    %c0_i32_0 = arith.constant 0 : i32
    %c0_i32_1 = arith.constant 0 : i32
    return %c0_i32, %c0_i32_0 : i32, i32
  }
  func.func @transform_4(%arg0: i32) -> (i32, i32) {
    %c0_i32 = arith.constant 0 : i32
    %c0_i32_0 = arith.constant 0 : i32
    %c0_i32_1 = arith.constant 0 : i32
    return %c0_i32, %c0_i32_0 : i32, i32
  }
  func.func @transform_5(%arg0: i32) -> (i32, i32) {
    %c0_i32 = arith.constant 0 : i32
    %c0_i32_0 = arith.constant 0 : i32
    return %arg0, %c0_i32 : i32, i32
  }
}

</mosaic_0001>

<llo_original>
// kernel: tpu_custom_call.1
$region0: #{tpu_custom_call.1}
  #allocation0 [shape = 'u32[]', space=smem, size = 0x4, offset = 0x4, fixed_abs, tag = 'smem constant byte address 0x4 - core index']
  #allocation1 [shape = 'u32[144,128]{1,0:T(1,128)}', space=vmem, size = 0x12000, scoped, tag = 'internal scratch']
  %s0 = inlined_call_operand.vmem [shape: f32[8,256], index: 0, kind: input, shape index: {}]
  %s1 = inlined_call_operand.vmem [shape: f32[4,8], index: 1, kind: input, shape index: {}]
  %s2 = inlined_call_operand.vmem [shape: f32[4,1], index: 2, kind: input, shape index: {}]
  %s3 = inlined_call_operand.vmem [shape: f32[8,4], index: 3, kind: input, shape index: {}]
  %s4 = inlined_call_operand.vmem [shape: f32[8,1], index: 4, kind: input, shape index: {}]
  %s5 = inlined_call_operand.hbm [shape: f32[8,256], index: 5, kind: output, shape index: {}]
  %s6 = sld [smem:[#allocation0]]
  $region30: #{tpu_custom_call.1} parent=0
    _
  %s8 = ssub.s32 1, %s6
  %s9 = scalar_select 0, %s8, %s6
  $region1: #{tpu_custom_call.1} parent=0
    #allocation2 [shape = 'u8[8192]{0}', space=vmem, size = 0x2000, scoped, tag = 'output window, operand 0, single buffered']
    #allocation3 [shape = 's32[1]{0}', space=sflag, size = 0x4, scoped, tag = 'scoped memory for tpu_custom_call.1']
    %10 = vsyncpa [#allocation3], 0
    // Predicated region
    $region2: #{tpu_custom_call.1} parent=1 // pred_check
      _
    $region3: #{tpu_custom_call.1} parent=1 // pred_check_branch
      %12 = sbr.rel (0) target = $region5
    $region4: #{tpu_custom_call.1} parent=1 // pred_region
      _
    $region5: #{tpu_custom_call.1} parent=1 // pred_fallthru
      _
    // Predicated region
    $region6: #{tpu_custom_call.1} parent=1 // pred_check
      _
    $region7: #{tpu_custom_call.1} parent=1 // pred_check_branch
      %14 = sbr.rel (0) target = $region9
    $region8: #{tpu_custom_call.1} parent=1 // pred_region
      _
    $region9: #{tpu_custom_call.1} parent=1 // pred_fallthru
      _
    // Predicated region
    $region10: #{tpu_custom_call.1} parent=1 // pred_check
      _
    $region11: #{tpu_custom_call.1} parent=1 // pred_check_branch
      %16 = sbr.rel (0) target = $region13
    $region12: #{tpu_custom_call.1} parent=1 // pred_region
      _
    $region13: #{tpu_custom_call.1} parent=1 // pred_fallthru
      _
    // Predicated region
    $region14: #{tpu_custom_call.1} parent=1 // pred_check
      _
    $region15: #{tpu_custom_call.1} parent=1 // pred_check_branch
      %18 = sbr.rel (0) target = $region17
    $region16: #{tpu_custom_call.1} parent=1 // pred_region
      _
    $region17: #{tpu_custom_call.1} parent=1 // pred_fallthru
      _
    // Predicated region
    $region18: #{tpu_custom_call.1} parent=1 // pred_check
      _
    $region19: #{tpu_custom_call.1} parent=1 // pred_check_branch
      %20 = sbr.rel (0) target = $region21
    $region20: #{tpu_custom_call.1} parent=1 // pred_region
      _
    $region21: #{tpu_custom_call.1} parent=1 // pred_fallthru
      _
    %v21 = vld [vmem:[%s0] sm:$0xff]
    %v22 = vld [vmem:[%s0 + $0x8] sm:$0xff]
    %v23 = vadd.f32 %v21, %v22
    %24 = vadd.xlane.f32.xlu0 %v23
    %v25 = vpop.xlane.xlu0 %24
    %v26 = vrcp.pop 256.0
    %v27 = vmul.f32 %v25, %v26
    %v28 = vld [vmem:[%s1] sm:$0xf]
    %v29 = vld [vmem:[%s2] sm:$0xf]
    %vm30 = vcmask 64512
    %v32 = vsel %vm30, %v28, 0
    %34 = vmatprep.subr.mxu0 0.0
    %35 = vmatpush1.msra.mxu0 %v27
    %36 = vmatprep.subr.mxu0 0.0
    %37 = vmatpush1.msra.mxu0 0.0
    %38 = vmatprep.subr.mxu0 0.0
    %39 = vmatpush1.msra.mxu0 0.0
    %40 = vmatprep.subr.mxu0 0.0
    %41 = vmatpush1.msra.mxu0 0.0
    %42 = vmatprep.subr.mxu0 0.0
    %43 = vmatpush1.msra.mxu0 0.0
    %44 = vmatprep.subr.mxu0 0.0
    %45 = vmatpush1.msra.mxu0 0.0
    %46 = vmatprep.subr.mxu0 0.0
    %47 = vmatpush1.msra.mxu0 0.0
    %48 = vmatprep.subr.mxu0 0.0
    %49 = vmatpush1.msra.mxu0 0.0
    %50 = vmatprep.subr.mxu0 0.0
    %51 = vmatpush1.msra.mxu0 0.0
    %52 = vmatprep.subr.mxu0 0.0
    %53 = vmatpush1.msra.mxu0 0.0
    %54 = vmatprep.subr.mxu0 0.0
    %55 = vmatpush1.msra.mxu0 0.0
    %56 = vmatprep.subr.mxu0 0.0
    %57 = vmatpush1.msra.mxu0 0.0
    %58 = vmatprep.subr.mxu0 0.0
    %59 = vmatpush1.msra.mxu0 0.0
    %60 = vmatprep.subr.mxu0 0.0
    %61 = vmatpush1.msra.mxu0 0.0
    %62 = vmatprep.subr.mxu0 0.0
    %63 = vmatpush1.msra.mxu0 0.0
    %64 = vmatprep.subr.mxu0 0.0
    %65 = vmatpush1.msra.mxu0 0.0
    %66 = vmatprep.subr.mxu0 0.0
    %67 = vmatpush1.msra.mxu0 0.0
    %68 = vmatprep.subr.mxu0 0.0
    %69 = vmatpush1.msra.mxu0 0.0
    %70 = vmatprep.subr.mxu0 0.0
    %71 = vmatpush1.msra.mxu0 0.0
    %72 = vmatprep.subr.mxu0 0.0
    %73 = vmatpush1.msra.mxu0 0.0
    %74 = vmatprep.subr.mxu0 0.0
    %75 = vmatpush1.msra.mxu0 0.0
    %76 = vmatprep.subr.mxu0 0.0
    %77 = vmatpush1.msra.mxu0 0.0
    %78 = vmatprep.subr.mxu0 0.0
    %79 = vmatpush1.msra.mxu0 0.0
    %80 = vmatprep.subr.mxu0 0.0
    %81 = vmatpush1.msra.mxu0 0.0
    %82 = vmatprep.subr.mxu0 0.0
    %83 = vmatpush1.msra.mxu0 0.0
    %84 = vmatprep.subr.mxu0 0.0
    %85 = vmatpush1.msra.mxu0 0.0
    %86 = vmatprep.subr.mxu0 0.0
    %87 = vmatpush1.msra.mxu0 0.0
    %88 = vmatprep.subr.mxu0 0.0
    %89 = vmatpush1.msra.mxu0 0.0
    %90 = vmatprep.subr.mxu0 0.0
    %91 = vmatpush1.msra.mxu0 0.0
    %92 = vmatprep.subr.mxu0 0.0
    %93 = vmatpush1.msra.mxu0 0.0
    %94 = vmatprep.subr.mxu0 0.0
    %95 = vmatpush1.msra.mxu0 0.0
    %96 = vmatprep.subr.mxu0 0.0
    %97 = vmatpush1.msra.mxu0 0.0
    %98 = vmatprep.mubr.f32.mxu0 0.0
    %99 = vmatmul.mubr.f32.gmra.mrb[0].mxu0 %v32
    %v100 = vpop.f32.mrb[0].mxu0
    %v101 = vadd.f32 %v29, %v100
    %v102 = vpop.f32.mrb[0].mxu0
    %103 = vdwg.mxu0
    %v104 = vxor.u32 %v101, 2147483648
    %v105 = vmul.f32 %v104, 1.442695
    %v106 = vpow.pop %v105
    %v107 = vadd.f32 %v106, 1.0
    %v108 = vrcp.pop %v107
    %v109 = vmul.f32 1.0, %v108
    %v110 = vmul.f32 %v101, %v109
    %v111 = vld [vmem:[%s3] sm:$0xff]
    %v112 = vld [vmem:[%s4] sm:$0xff]
    %vm113 = vcmask 31744
    %v115 = vsel %vm113, %v111, 0
    %vm117 = vcmask 1043456
    %v119 = vsel %vm117, %v110, 0
    %121 = vmatprep.subr.mxu0 0.0
    %122 = vmatpush1.msra.mxu0 %v119
    %123 = vmatprep.subr.mxu0 0.0
    %124 = vmatpush1.msra.mxu0 0.0
    %125 = vmatprep.subr.mxu0 0.0
    %126 = vmatpush1.msra.mxu0 0.0
    %127 = vmatprep.subr.mxu0 0.0
    %128 = vmatpush1.msra.mxu0 0.0
    %129 = vmatprep.subr.mxu0 0.0
    %130 = vmatpush1.msra.mxu0 0.0
    %131 = vmatprep.subr.mxu0 0.0
    %132 = vmatpush1.msra.mxu0 0.0
    %133 = vmatprep.subr.mxu0 0.0
    %134 = vmatpush1.msra.mxu0 0.0
    %135 = vmatprep.subr.mxu0 0.0
    %136 = vmatpush1.msra.mxu0 0.0
    %137 = vmatprep.subr.mxu0 0.0
    %138 = vmatpush1.msra.mxu0 0.0
    %139 = vmatprep.subr.mxu0 0.0
    %140 = vmatpush1.msra.mxu0 0.0
    %141 = vmatprep.subr.mxu0 0.0
    %142 = vmatpush1.msra.mxu0 0.0
    %143 = vmatprep.subr.mxu0 0.0
    %144 = vmatpush1.msra.mxu0 0.0
    %145 = vmatprep.subr.mxu0 0.0
    %146 = vmatpush1.msra.mxu0 0.0
    %147 = vmatprep.subr.mxu0 0.0
    %148 = vmatpush1.msra.mxu0 0.0
    %149 = vmatprep.subr.mxu0 0.0
    %150 = vmatpush1.msra.mxu0 0.0
    %151 = vmatprep.subr.mxu0 0.0
    %152 = vmatpush1.msra.mxu0 0.0
    %153 = vmatprep.subr.mxu0 0.0
    %154 = vmatpush1.msra.mxu0 0.0
    %155 = vmatprep.subr.mxu0 0.0
    %156 = vmatpush1.msra.mxu0 0.0
    %157 = vmatprep.subr.mxu0 0.0
    %158 = vmatpush1.msra.mxu0 0.0
    %159 = vmatprep.subr.mxu0 0.0
    %160 = vmatpush1.msra.mxu0 0.0
    %161 = vmatprep.subr.mxu0 0.0
    %162 = vmatpush1.msra.mxu0 0.0
    %163 = vmatprep.subr.mxu0 0.0
    %164 = vmatpush1.msra.mxu0 0.0
    %165 = vmatprep.subr.mxu0 0.0
    %166 = vmatpush1.msra.mxu0 0.0
    %167 = vmatprep.subr.mxu0 0.0
    %168 = vmatpush1.msra.mxu0 0.0
    %169 = vmatprep.subr.mxu0 0.0
    %170 = vmatpush1.msra.mxu0 0.0
    %171 = vmatprep.subr.mxu0 0.0
    %172 = vmatpush1.msra.mxu0 0.0
    %173 = vmatprep.subr.mxu0 0.0
    %174 = vmatpush1.msra.mxu0 0.0
    %175 = vmatprep.subr.mxu0 0.0
    %176 = vmatpush1.msra.mxu0 0.0
    %177 = vmatprep.subr.mxu0 0.0
    %178 = vmatpush1.msra.mxu0 0.0
    %179 = vmatprep.subr.mxu0 0.0
    %180 = vmatpush1.msra.mxu0 0.0
    %181 = vmatprep.subr.mxu0 0.0
    %182 = vmatpush1.msra.mxu0 0.0
    %183 = vmatprep.subr.mxu0 0.0
    %184 = vmatpush1.msra.mxu0 0.0
    %185 = vmatprep.mubr.f32.mxu0 0.0
    %186 = vmatmul.mubr.f32.gmra.mrb[0].mxu0 %v115
    %v187 = vpop.f32.mrb[0].mxu0
    %v188 = vadd.f32 %v112, %v187
    %v189 = vpop.f32.mrb[0].mxu0
    %190 = vdwg.mxu0
    %v191 = vxor.u32 %v188, 2147483648
    %v192 = vmul.f32 %v191, 1.442695
    %v193 = vpow.pop %v192
    %v194 = vadd.f32 %v193, 1.0
    %v195 = vrcp.pop %v194
    %v196 = vmul.f32 1.0, %v195
    %198 = vset.pattern.permute.xlu0 0
    %199 = vperm.xlu0 %198, %v196
    %v200 = vpop.permute.xlu0 %199
    %v202 = vmul.f32 %v21, %v200
    %v203 = vmul.f32 %v22, %v200
    %204 = vst [vmem:[#allocation2] sm:$0xff] %v202
    %205 = vst [vmem:[#allocation2 + $0x8] sm:$0xff] %v203
    // Predicated region
    $region22: #{tpu_custom_call.1} parent=1 // pred_check
      _
    $region23: #{tpu_custom_call.1} parent=1 // pred_check_branch
      %207 = sbr.rel (0) target = $region25
    $region24: #{tpu_custom_call.1} parent=1 // pred_region
      %s209 = ssub.s32 256, 256
      %210 = vsyncadd [#allocation3], %s209
      %s212 = sshll.u32 [#allocation2], 4
      %s213 = int_to_ptr.vmem [resolvable:$true] %s212
      %215 = dma.vmem_to_hbm [thread:$0]  %s213, 256, %s5, [#allocation3]
    $region25: #{tpu_custom_call.1} parent=1 // pred_fallthru
      _
    // Predicated region
    $region26: #{tpu_custom_call.1} parent=1 // pred_check
      _
    $region27: #{tpu_custom_call.1} parent=1 // pred_check_branch
      %217 = sbr.rel (0) target = $region29
    $region28: #{tpu_custom_call.1} parent=1 // pred_region
      %218 = dma.done [#allocation3], 256
    $region29: #{tpu_custom_call.1} parent=1 // pred_fallthru
      _
    %219 = vsyncpa [#allocation3], 1

</llo_original>
